<compile_context>
chip_gen: v6e
topology: v6e:2x2x1
jax: 0.10.0
libtpu: 0.0.40
codegen_flags: <defaults>
</compile_context>

<pallas_src>
import jax
import jax.numpy as jnp
from jax import lax
from jax.experimental import pallas as pl
from jax.experimental.pallas import tpu as pltpu

_TILE_B_MAX = 1024  # batch rows per grid step (multiple of 128); ~400 KiB/tile of
                    # streamed input w/ double buffering -> comfortably in VMEM.


def _round_up(x, m):
    return (x + m - 1) // m * m


def _mlp_kernel(s_ref, e_ref, w1s_ref, w1e_ref, b1_ref, w2_ref, b2_ref,
                w3_ref, b3_ref, o_ref):
    """One batch tile of the full 3-layer MLP, entirely VMEM-resident."""
    s = s_ref[...]                                   # (tile, 49) f32
    e = e_ref[...]                                   # (tile, 1)  f32

    # fc1, split form of cat([state, extra]) @ W1:
    #   state @ W1[:49] + extra * W1[49:] + b1
    h1 = jnp.dot(s, w1s_ref[...], preferred_element_type=jnp.float32)
    h1 = h1 + e * w1e_ref[...] + b1_ref[...]
    h1 = jnp.maximum(h1, 0.0)                        # (tile, 60)

    # fc2
    h2 = jnp.dot(h1, w2_ref[...], preferred_element_type=jnp.float32)
    h2 = jnp.maximum(h2 + b2_ref[...], 0.0)          # (tile, 20)

    # fc3, emitted transposed so the batch sits in the lane dimension:
    #   o_t[n, b] = sum_k W3[n, k] * h2[b, k]        -> (8, tile), lane-dense store
    o_t = lax.dot_general(
        w3_ref[...], h2,
        dimension_numbers=(((1,), (1,)), ((), ())),
        preferred_element_type=jnp.float32)          # (8, tile)
    o_ref[...] = (o_t + b3_ref[...]).astype(o_ref.dtype)


def prepare_params(params):
    """One-time conversion from PyTorch layout (out,in)/(out,) to kernel layout."""
    w1, b1, w2, b2, w3, b3 = params
    w1t = w1.T                                             # (50, 60)
    w1s = w1t[:49, :]                                      # (49, 60) state part
    w1e = w1t[49:, :]                                      # (1, 60)  extra part
    b1r = b1.reshape(1, -1)                                # (1, 60)
    w2t = w2.T                                             # (60, 20)
    b2r = b2.reshape(1, -1)                                # (1, 20)
    w3p = jnp.zeros((8, 20), w3.dtype).at[:6, :].set(w3)   # (8, 20), rows 6..7 zero
    b3p = jnp.zeros((8, 1), b3.dtype).at[:6, 0].set(b3)    # (8, 1)
    return (w1s, w1e, b1r, w2t, b2r, w3p, b3p)


def bomb_net_forward(state, extra, kparams):
    """state: (B, 1, 7, 7) f32 (NCHW), extra: (B, 1) f32, kparams: prepare_params(...)."""
    B = state.shape[0]
    s = state.reshape(B, 49).astype(jnp.float32)
    e = extra.reshape(B, 1).astype(jnp.float32)

    tile = min(_TILE_B_MAX, _round_up(B, 128))
    b_pad = _round_up(B, tile)
    if b_pad != B:
        s = jnp.pad(s, ((0, b_pad - B), (0, 0)))
        e = jnp.pad(e, ((0, b_pad - B), (0, 0)))
    nsteps = b_pad // tile

    w1s, w1e, b1r, w2t, b2r, w3p, b3p = kparams
    param_bytes = sum(int(p.size) * p.dtype.itemsize for p in kparams)
    flops = 2 * b_pad * (49 * 60 + 60 * 20 + 20 * 8) + b_pad * (60 + 20 + 8)
    bytes_accessed = b_pad * 50 * 4 + b_pad * 8 * 4 + param_bytes

    const = lambda i: (0, 0)  # weights/biases: same block every step -> VMEM-resident
    out_t = pl.pallas_call(
        _mlp_kernel,
        out_shape=jax.ShapeDtypeStruct((8, b_pad), jnp.float32),
        grid=(nsteps,),
        in_specs=[
            pl.BlockSpec((tile, 49), lambda i: (i, 0)),   # state tile (streams)
            pl.BlockSpec((tile, 1), lambda i: (i, 0)),    # extra tile (streams)
            pl.BlockSpec((49, 60), const),                # W1 state part
            pl.BlockSpec((1, 60), const),                 # W1 extra row
            pl.BlockSpec((1, 60), const),                 # b1
            pl.BlockSpec((60, 20), const),                # W2
            pl.BlockSpec((1, 20), const),                 # b2
            pl.BlockSpec((8, 20), const),                 # W3 (padded 6->8 rows)
            pl.BlockSpec((8, 1), const),                  # b3 (padded)
        ],
        out_specs=pl.BlockSpec((8, tile), lambda i: (0, i)),
        compiler_params=pltpu.CompilerParams(
            dimension_semantics=("parallel",)),
        cost_estimate=pl.CostEstimate(
            flops=flops, transcendentals=0, bytes_accessed=bytes_accessed),
    )(s, e, w1s, w1e, b1r, w2t, b2r, w3p, b3p)

    # (8, B_pad) lane-dense slab -> (B, 6): drop pad rows/cols, back to batch-major.
    return out_t[:6, :B].T


def init_params(key):
    """Deterministic parameter init matching nn.Linear shapes (out, in)."""
    dims = [(60, 50), (20, 60), (6, 20)]
    params = []
    for i, (out_f, in_f) in enumerate(dims):
        kw, kb = jax.random.split(jax.random.fold_in(key, i))
        bound = 1.0 / jnp.sqrt(in_f)
        w = jax.random.uniform(kw, (out_f, in_f), jnp.float32, -bound, bound)
        b = jax.random.uniform(kb, (out_f,), jnp.float32, -bound, bound)
        params += [w, b]
    return tuple(params)


def _reference_forward(state, extra, params):
    """Pure-JAX reference mirroring the PyTorch forward."""
    w1, b1, w2, b2, w3, b3 = params
    x = jnp.concatenate([state.reshape(state.shape[0], -1), extra], axis=1)
    x = jax.nn.relu(x @ w1.T + b1)
    x = jax.nn.relu(x @ w2.T + b2)
    return x @ w3.T + b3


if __name__ == "__main__":
    key = jax.random.PRNGKey(0)
    k_state, k_extra, k_param = jax.random.split(key, 3)

    params = init_params(k_param)
    kparams = prepare_params(params)   # one-time layout conversion (hoisted)
    fwd = jax.jit(bomb_net_forward)

    # Primary small-shape check (batch=2).
    B = 2
    state = jax.random.normal(k_state, (B, 1, 7, 7), jnp.float32)  # flattens to 49
    extra = jax.random.normal(k_extra, (B, 1), jnp.float32)        # 49 + 1 = 50 feats
    out = jax.block_until_ready(fwd(state, extra, kparams))
    ref = _reference_forward(state, extra, params)
    assert out.shape == (B, 6)
    assert jnp.allclose(out, ref, atol=1e-5, rtol=1e-5)

    # Secondary check exercising the batch-padding path (B not a multiple of 128).
    B2 = 197
    state2 = jax.random.normal(jax.random.fold_in(k_state, 1), (B2, 1, 7, 7), jnp.float32)
    extra2 = jax.random.normal(jax.random.fold_in(k_extra, 1), (B2, 1), jnp.float32)
    out2 = jax.block_until_ready(fwd(state2, extra2, kparams))
    ref2 = _reference_forward(state2, extra2, params)
    assert out2.shape == (B2, 6)
    assert jnp.allclose(out2, ref2, atol=1e-5, rtol=1e-5)

    print("KERNEL_OK")
</pallas_src>

<mosaic_0001>
module attributes {stable_mosaic.version = 11 : i64} {
  func.func @_mlp_kernel(%arg0: i32, %arg1: memref<128x49xf32, #tpu.memory_space<vmem>>, %arg2: memref<128x1xf32, #tpu.memory_space<vmem>>, %arg3: memref<49x60xf32, #tpu.memory_space<vmem>>, %arg4: memref<1x60xf32, #tpu.memory_space<vmem>>, %arg5: memref<1x60xf32, #tpu.memory_space<vmem>>, %arg6: memref<60x20xf32, #tpu.memory_space<vmem>>, %arg7: memref<1x20xf32, #tpu.memory_space<vmem>>, %arg8: memref<8x20xf32, #tpu.memory_space<vmem>>, %arg9: memref<8x1xf32, #tpu.memory_space<vmem>>, %arg10: memref<8x128xf32, #tpu.memory_space<vmem>>) attributes {dimension_semantics = [#tpu.dimension_semantics<parallel>], iteration_bounds = array<i64: 1>, scalar_prefetch = 0 : i64, scratch_operands = 0 : i64, tpu.core_type = #tpu.core_type<tc>, window_params = [{transform_indices = @transform_0, window_bounds = array<i64: 128, 49>}, {transform_indices = @transform_1, window_bounds = array<i64: 128, 1>}, {pipeline_mode = #tpu.pipeline_mode<synchronous>, transform_indices = @transform_2, window_bounds = array<i64: 49, 60>}, {pipeline_mode = #tpu.pipeline_mode<synchronous>, transform_indices = @transform_3, window_bounds = array<i64: 1, 60>}, {pipeline_mode = #tpu.pipeline_mode<synchronous>, transform_indices = @transform_4, window_bounds = array<i64: 1, 60>}, {pipeline_mode = #tpu.pipeline_mode<synchronous>, transform_indices = @transform_5, window_bounds = array<i64: 60, 20>}, {pipeline_mode = #tpu.pipeline_mode<synchronous>, transform_indices = @transform_6, window_bounds = array<i64: 1, 20>}, {pipeline_mode = #tpu.pipeline_mode<synchronous>, transform_indices = @transform_7, window_bounds = array<i64: 8, 20>}, {pipeline_mode = #tpu.pipeline_mode<synchronous>, transform_indices = @transform_8, window_bounds = array<i64: 8, 1>}, {transform_indices = @transform_9, window_bounds = array<i64: 8, 128>}]} {
    %c0 = arith.constant 0 : index
    %c0_0 = arith.constant 0 : index
    %0 = vector.load %arg1[%c0, %c0_0] : memref<128x49xf32, #tpu.memory_space<vmem>>, vector<128x49xf32>
    %c0_1 = arith.constant 0 : index
    %c0_2 = arith.constant 0 : index
    %1 = vector.load %arg2[%c0_1, %c0_2] : memref<128x1xf32, #tpu.memory_space<vmem>>, vector<128x1xf32>
    %c0_3 = arith.constant 0 : index
    %c0_4 = arith.constant 0 : index
    %2 = vector.load %arg3[%c0_3, %c0_4] : memref<49x60xf32, #tpu.memory_space<vmem>>, vector<49x60xf32>
    %cst = arith.constant dense<0.000000e+00> : vector<128x60xf32>
    %3 = tpu.matmul %0, %2, %cst {dimension_numbers = #tpu.dot_dimension_numbers<[1], [0], [0], [1], [0, 0, 1, 1], [], []>} : vector<128x49xf32>, vector<49x60xf32>, vector<128x60xf32> -> vector<128x60xf32>
    %c0_5 = arith.constant 0 : index
    %c0_6 = arith.constant 0 : index
    %4 = vector.load %arg4[%c0_5, %c0_6] : memref<1x60xf32, #tpu.memory_space<vmem>>, vector<1x60xf32>
    %5 = vector.broadcast %1 : vector<128x1xf32> to vector<128x60xf32>
    %6 = vector.broadcast %4 : vector<1x60xf32> to vector<128x60xf32>
    %7 = arith.mulf %5, %6 : vector<128x60xf32>
    %8 = arith.addf %3, %7 : vector<128x60xf32>
    %c0_7 = arith.constant 0 : index
    %c0_8 = arith.constant 0 : index
    %9 = vector.load %arg5[%c0_7, %c0_8] : memref<1x60xf32, #tpu.memory_space<vmem>>, vector<1x60xf32>
    %10 = vector.broadcast %9 : vector<1x60xf32> to vector<128x60xf32>
    %11 = arith.addf %8, %10 : vector<128x60xf32>
    %cst_9 = arith.constant 0.000000e+00 : f32
    %12 = vector.broadcast %cst_9 : f32 to vector<128x60xf32>
    %13 = arith.maximumf %11, %12 : vector<128x60xf32>
    %c0_10 = arith.constant 0 : index
    %c0_11 = arith.constant 0 : index
    %14 = vector.load %arg6[%c0_10, %c0_11] : memref<60x20xf32, #tpu.memory_space<vmem>>, vector<60x20xf32>
    %cst_12 = arith.constant dense<0.000000e+00> : vector<128x20xf32>
    %15 = tpu.matmul %13, %14, %cst_12 {dimension_numbers = #tpu.dot_dimension_numbers<[1], [0], [0], [1], [0, 0, 1, 1], [], []>} : vector<128x60xf32>, vector<60x20xf32>, vector<128x20xf32> -> vector<128x20xf32>
    %c0_13 = arith.constant 0 : index
    %c0_14 = arith.constant 0 : index
    %16 = vector.load %arg7[%c0_13, %c0_14] : memref<1x20xf32, #tpu.memory_space<vmem>>, vector<1x20xf32>
    %17 = vector.broadcast %16 : vector<1x20xf32> to vector<128x20xf32>
    %18 = arith.addf %15, %17 : vector<128x20xf32>
    %cst_15 = arith.constant 0.000000e+00 : f32
    %19 = vector.broadcast %cst_15 : f32 to vector<128x20xf32>
    %20 = arith.maximumf %18, %19 : vector<128x20xf32>
    %c0_16 = arith.constant 0 : index
    %c0_17 = arith.constant 0 : index
    %21 = vector.load %arg8[%c0_16, %c0_17] : memref<8x20xf32, #tpu.memory_space<vmem>>, vector<8x20xf32>
    %cst_18 = arith.constant dense<0.000000e+00> : vector<8x128xf32>
    %22 = tpu.matmul %21, %20, %cst_18 {dimension_numbers = #tpu.dot_dimension_numbers<[1], [1], [0], [0], [0, 0, 1, 0], [], []>} : vector<8x20xf32>, vector<128x20xf32>, vector<8x128xf32> -> vector<8x128xf32>
    %c0_19 = arith.constant 0 : index
    %c0_20 = arith.constant 0 : index
    %23 = vector.load %arg9[%c0_19, %c0_20] : memref<8x1xf32, #tpu.memory_space<vmem>>, vector<8x1xf32>
    %24 = vector.broadcast %23 : vector<8x1xf32> to vector<8x128xf32>
    %25 = arith.addf %22, %24 : vector<8x128xf32>
    %c0_21 = arith.constant 0 : index
    %c0_22 = arith.constant 0 : index
    %26 = vector.load %arg10[%c0_21, %c0_22] : memref<8x128xf32, #tpu.memory_space<vmem>>, vector<8x128xf32>
    tpu.vector_store %arg10[%c0_21, %c0_22], %25 {strides = array<i32>} : memref<8x128xf32, #tpu.memory_space<vmem>>, vector<8x128xf32>,
    return
  }
  func.func @transform_0(%arg0: i32) -> (i32, i32) {
    %c0_i32 = arith.constant 0 : i32
    %c0_i32_0 = arith.constant 0 : i32
    return %arg0, %c0_i32 : i32, i32
  }
  func.func @transform_1(%arg0: i32) -> (i32, i32) {
    %c0_i32 = arith.constant 0 : i32
    %c0_i32_0 = arith.constant 0 : i32
    return %arg0, %c0_i32 : i32, i32
  }
  func.func @transform_2(%arg0: i32) -> (i32, i32) {
    %c0_i32 = arith.constant 0 : i32
    %c0_i32_0 = arith.constant 0 : i32
    %c0_i32_1 = arith.constant 0 : i32
    return %c0_i32, %c0_i32_0 : i32, i32
  }
  func.func @transform_3(%arg0: i32) -> (i32, i32) {
    %c0_i32 = arith.constant 0 : i32
    %c0_i32_0 = arith.constant 0 : i32
    %c0_i32_1 = arith.constant 0 : i32
    return %c0_i32, %c0_i32_0 : i32, i32
  }
  func.func @transform_4(%arg0: i32) -> (i32, i32) {
    %c0_i32 = arith.constant 0 : i32
    %c0_i32_0 = arith.constant 0 : i32
    %c0_i32_1 = arith.constant 0 : i32
    return %c0_i32, %c0_i32_0 : i32, i32
  }
  func.func @transform_5(%arg0: i32) -> (i32, i32) {
    %c0_i32 = arith.constant 0 : i32
    %c0_i32_0 = arith.constant 0 : i32
    %c0_i32_1 = arith.constant 0 : i32
    return %c0_i32, %c0_i32_0 : i32, i32
  }
  func.func @transform_6(%arg0: i32) -> (i32, i32) {
    %c0_i32 = arith.constant 0 : i32
    %c0_i32_0 = arith.constant 0 : i32
    %c0_i32_1 = arith.constant 0 : i32
    return %c0_i32, %c0_i32_0 : i32, i32
  }
  func.func @transform_7(%arg0: i32) -> (i32, i32) {
    %c0_i32 = arith.constant 0 : i32
    %c0_i32_0 = arith.constant 0 : i32
    %c0_i32_1 = arith.constant 0 : i32
    return %c0_i32, %c0_i32_0 : i32, i32
  }
  func.func @transform_8(%arg0: i32) -> (i32, i32) {
    %c0_i32 = arith.constant 0 : i32
    %c0_i32_0 = arith.constant 0 : i32
    %c0_i32_1 = arith.constant 0 : i32
    return %c0_i32, %c0_i32_0 : i32, i32
  }
  func.func @transform_9(%arg0: i32) -> (i32, i32) {
    %c0_i32 = arith.constant 0 : i32
    %c0_i32_0 = arith.constant 0 : i32
    return %c0_i32, %arg0 : i32, i32
  }
}

</mosaic_0001>

<llo_original>
// kernel: bomb_net_forward.1
$region0: #{bomb_net_forward.1}
  #allocation0 [shape = 'u32[]', space=smem, size = 0x4, offset = 0x4, fixed_abs, tag = 'smem constant byte address 0x4 - core index']
  #allocation1 [shape = 'u32[144,128]{1,0:T(1,128)}', space=vmem, size = 0x12000, scoped, tag = 'internal scratch']
  %s0 = inlined_call_operand.vmem [shape: f32[128,49], index: 0, kind: input, shape index: {}]
  %s1 = inlined_call_operand.vmem [shape: f32[128,1], index: 1, kind: input, shape index: {}]
  %s2 = inlined_call_operand.vmem [shape: f32[49,60], index: 2, kind: input, shape index: {}]
  %s3 = inlined_call_operand.vmem [shape: f32[1,60], index: 3, kind: input, shape index: {}]
  %s4 = inlined_call_operand.vmem [shape: f32[1,60], index: 4, kind: input, shape index: {}]
  %s5 = inlined_call_operand.vmem [shape: f32[60,20], index: 5, kind: input, shape index: {}]
  %s6 = inlined_call_operand.vmem [shape: f32[1,20], index: 6, kind: input, shape index: {}]
  %s7 = inlined_call_operand.vmem [shape: f32[8,20], index: 7, kind: input, shape index: {}]
  %s8 = inlined_call_operand.vmem [shape: f32[8,1], index: 8, kind: input, shape index: {}]
  %s9 = inlined_call_operand.vmem [shape: f32[8,128], index: 9, kind: output, shape index: {}]
  %s10 = sld [smem:[#allocation0]]
  $region46: #{bomb_net_forward.1} parent=0
    _
  %s12 = ssub.s32 1, %s10
  %s13 = scalar_select 0, %s12, %s10
  // Predicated region
  $region2: #{bomb_net_forward.1} parent=0 // pred_check
    _
  $region3: #{bomb_net_forward.1} parent=0 // pred_check_branch
    %15 = sbr.rel (0) target = $region5
  $region4: #{bomb_net_forward.1} parent=0 // pred_region
    _
  $region5: #{bomb_net_forward.1} parent=0 // pred_fallthru
    _
  // Predicated region
  $region6: #{bomb_net_forward.1} parent=0 // pred_check
    _
  $region7: #{bomb_net_forward.1} parent=0 // pred_check_branch
    %17 = sbr.rel (0) target = $region9
  $region8: #{bomb_net_forward.1} parent=0 // pred_region
    _
  $region9: #{bomb_net_forward.1} parent=0 // pred_fallthru
    _
  // Predicated region
  $region10: #{bomb_net_forward.1} parent=0 // pred_check
    _
  $region11: #{bomb_net_forward.1} parent=0 // pred_check_branch
    %19 = sbr.rel (0) target = $region13
  $region12: #{bomb_net_forward.1} parent=0 // pred_region
    _
  $region13: #{bomb_net_forward.1} parent=0 // pred_fallthru
    _
  // Predicated region
  $region14: #{bomb_net_forward.1} parent=0 // pred_check
    _
  $region15: #{bomb_net_forward.1} parent=0 // pred_check_branch
    %21 = sbr.rel (0) target = $region17
  $region16: #{bomb_net_forward.1} parent=0 // pred_region
    _
  $region17: #{bomb_net_forward.1} parent=0 // pred_fallthru
    _
  // Predicated region
  $region18: #{bomb_net_forward.1} parent=0 // pred_check
    _
  $region19: #{bomb_net_forward.1} parent=0 // pred_check_branch
    %23 = sbr.rel (0) target = $region21
  $region20: #{bomb_net_forward.1} parent=0 // pred_region
    _
  $region21: #{bomb_net_forward.1} parent=0 // pred_fallthru
    _
  // Predicated region
  $region22: #{bomb_net_forward.1} parent=0 // pred_check
    _
  $region23: #{bomb_net_forward.1} parent=0 // pred_check_branch
    %25 = sbr.rel (0) target = $region25
  $region24: #{bomb_net_forward.1} parent=0 // pred_region
    _
  $region25: #{bomb_net_forward.1} parent=0 // pred_fallthru
    _
  // Predicated region
  $region26: #{bomb_net_forward.1} parent=0 // pred_check
    _
  $region27: #{bomb_net_forward.1} parent=0 // pred_check_branch
    %27 = sbr.rel (0) target = $region29
  $region28: #{bomb_net_forward.1} parent=0 // pred_region
    _
  $region29: #{bomb_net_forward.1} parent=0 // pred_fallthru
    _
  // Predicated region
  $region30: #{bomb_net_forward.1} parent=0 // pred_check
    _
  $region31: #{bomb_net_forward.1} parent=0 // pred_check_branch
    %29 = sbr.rel (0) target = $region33
  $region32: #{bomb_net_forward.1} parent=0 // pred_region
    _
  $region33: #{bomb_net_forward.1} parent=0 // pred_fallthru
    _
  // Predicated region
  $region34: #{bomb_net_forward.1} parent=0 // pred_check
    _
  $region35: #{bomb_net_forward.1} parent=0 // pred_check_branch
    %31 = sbr.rel (0) target = $region37
  $region36: #{bomb_net_forward.1} parent=0 // pred_region
    _
  $region37: #{bomb_net_forward.1} parent=0 // pred_fallthru
    _
  %v32 = vld [vmem:[%s0] sm:$0xff]
  %v33 = vld [vmem:[%s0 + $0x8] sm:$0xff]
  %v34 = vld [vmem:[%s0 + $0x10] sm:$0xff]
  %v35 = vld [vmem:[%s0 + $0x18] sm:$0xff]
  %v36 = vld [vmem:[%s0 + $0x20] sm:$0xff]
  %v37 = vld [vmem:[%s0 + $0x28] sm:$0xff]
  %v38 = vld [vmem:[%s0 + $0x30] sm:$0xff]
  %v39 = vld [vmem:[%s0 + $0x38] sm:$0xff]
  %v40 = vld [vmem:[%s0 + $0x40] sm:$0xff]
  %v41 = vld [vmem:[%s0 + $0x48] sm:$0xff]
  %v42 = vld [vmem:[%s0 + $0x50] sm:$0xff]
  %v43 = vld [vmem:[%s0 + $0x58] sm:$0xff]
  %v44 = vld [vmem:[%s0 + $0x60] sm:$0xff]
  %v45 = vld [vmem:[%s0 + $0x68] sm:$0xff]
  %v46 = vld [vmem:[%s0 + $0x70] sm:$0xff]
  %v47 = vld [vmem:[%s0 + $0x78] sm:$0xff]
  %v48 = vld [vmem:[%s1] sm:$0xff]
  %v49 = vld [vmem:[%s1 + $0x8] sm:$0xff]
  %v50 = vld [vmem:[%s1 + $0x10] sm:$0xff]
  %v51 = vld [vmem:[%s1 + $0x18] sm:$0xff]
  %v52 = vld [vmem:[%s1 + $0x20] sm:$0xff]
  %v53 = vld [vmem:[%s1 + $0x28] sm:$0xff]
  %v54 = vld [vmem:[%s1 + $0x30] sm:$0xff]
  %v55 = vld [vmem:[%s1 + $0x38] sm:$0xff]
  %v56 = vld [vmem:[%s1 + $0x40] sm:$0xff]
  %v57 = vld [vmem:[%s1 + $0x48] sm:$0xff]
  %v58 = vld [vmem:[%s1 + $0x50] sm:$0xff]
  %v59 = vld [vmem:[%s1 + $0x58] sm:$0xff]
  %v60 = vld [vmem:[%s1 + $0x60] sm:$0xff]
  %v61 = vld [vmem:[%s1 + $0x68] sm:$0xff]
  %v62 = vld [vmem:[%s1 + $0x70] sm:$0xff]
  %v63 = vld [vmem:[%s1 + $0x78] sm:$0xff]
  %v64 = vld [vmem:[%s2] sm:$0xff]
  %v65 = vld [vmem:[%s2 + $0x8] sm:$0xff]
  %v66 = vld [vmem:[%s2 + $0x10] sm:$0xff]
  %v67 = vld [vmem:[%s2 + $0x18] sm:$0xff]
  %v68 = vld [vmem:[%s2 + $0x20] sm:$0xff]
  %v69 = vld [vmem:[%s2 + $0x28] sm:$0xff]
  %v70 = vld [vmem:[%s2 + $0x30] sm:$0x1]
  %v71 = vld [vmem:[%s3] sm:$0x1]
  %73 = vset.pattern.permute.xlu0 0
  %74 = vperm.xlu0 %73, %v48
  %v75 = vpop.permute.xlu0 %74
  %78 = vset.pattern.permute.xlu0 0
  %79 = vperm.xlu0 %78, %v49
  %v80 = vpop.permute.xlu0 %79
  %83 = vset.pattern.permute.xlu0 0
  %84 = vperm.xlu0 %83, %v50
  %v85 = vpop.permute.xlu0 %84
  %88 = vset.pattern.permute.xlu0 0
  %89 = vperm.xlu0 %88, %v51
  %v90 = vpop.permute.xlu0 %89
  %93 = vset.pattern.permute.xlu0 0
  %94 = vperm.xlu0 %93, %v52
  %v95 = vpop.permute.xlu0 %94
  %98 = vset.pattern.permute.xlu0 0
  %99 = vperm.xlu0 %98, %v53
  %v100 = vpop.permute.xlu0 %99
  %103 = vset.pattern.permute.xlu0 0
  %104 = vperm.xlu0 %103, %v54
  %v105 = vpop.permute.xlu0 %104
  %108 = vset.pattern.permute.xlu0 0
  %109 = vperm.xlu0 %108, %v55
  %v110 = vpop.permute.xlu0 %109
  %113 = vset.pattern.permute.xlu0 0
  %114 = vperm.xlu0 %113, %v56
  %v115 = vpop.permute.xlu0 %114
  %118 = vset.pattern.permute.xlu0 0
  %119 = vperm.xlu0 %118, %v57
  %v120 = vpop.permute.xlu0 %119
  %123 = vset.pattern.permute.xlu0 0
  %124 = vperm.xlu0 %123, %v58
  %v125 = vpop.permute.xlu0 %124
  %128 = vset.pattern.permute.xlu0 0
  %129 = vperm.xlu0 %128, %v59
  %v130 = vpop.permute.xlu0 %129
  %133 = vset.pattern.permute.xlu0 0
  %134 = vperm.xlu0 %133, %v60
  %v135 = vpop.permute.xlu0 %134
  %138 = vset.pattern.permute.xlu0 0
  %139 = vperm.xlu0 %138, %v61
  %v140 = vpop.permute.xlu0 %139
  %143 = vset.pattern.permute.xlu0 0
  %144 = vperm.xlu0 %143, %v62
  %v145 = vpop.permute.xlu0 %144
  %148 = vset.pattern.permute.xlu0 0
  %149 = vperm.xlu0 %148, %v63
  %v150 = vpop.permute.xlu0 %149
  %v153 = vlaneseq
  %v154 = vshrl.u32 %v153, 7
  %v155 = vsub.s32 0, %v154
  %v156 = vrot.slane %v71, %v155
  %v158 = vmul.f32 %v75, %v156
  %v159 = vmul.f32 %v80, %v156
  %v160 = vmul.f32 %v85, %v156
  %v161 = vmul.f32 %v90, %v156
  %v162 = vmul.f32 %v95, %v156
  %v163 = vmul.f32 %v100, %v156
  %v164 = vmul.f32 %v105, %v156
  %v165 = vmul.f32 %v110, %v156
  %v166 = vmul.f32 %v115, %v156
  %v167 = vmul.f32 %v120, %v156
  %v168 = vmul.f32 %v125, %v156
  %v169 = vmul.f32 %v130, %v156
  %v170 = vmul.f32 %v135, %v156
  %v171 = vmul.f32 %v140, %v156
  %v172 = vmul.f32 %v145, %v156
  %v173 = vmul.f32 %v150, %v156
  %vm174 = vcmask 400384
  %v176 = vsel %vm174, %v32, 0
  %v179 = vsel %vm174, %v33, 0
  %v182 = vsel %vm174, %v34, 0
  %v185 = vsel %vm174, %v35, 0
  %v188 = vsel %vm174, %v36, 0
  %v191 = vsel %vm174, %v37, 0
  %v194 = vsel %vm174, %v38, 0
  %v197 = vsel %vm174, %v39, 0
  %v200 = vsel %vm174, %v40, 0
  %v203 = vsel %vm174, %v41, 0
  %v206 = vsel %vm174, %v42, 0
  %v209 = vsel %vm174, %v43, 0
  %v212 = vsel %vm174, %v44, 0
  %v215 = vsel %vm174, %v45, 0
  %v218 = vsel %vm174, %v46, 0
  %v221 = vsel %vm174, %v47, 0
  %vm223 = vcmask 1040384
  %v225 = vsel %vm223, %v70, 0
  %227 = vmatprep.subr.mxu0 0.0
  %228 = vmatpush1.msra.mxu0 0.0
  %229 = vmatprep.subr.mxu0 0.0
  %230 = vmatpush1.msra.mxu0 0.0
  %231 = vmatprep.subr.mxu0 0.0
  %232 = vmatpush1.msra.mxu0 0.0
  %233 = vmatprep.subr.mxu0 0.0
  %234 = vmatpush1.msra.mxu0 0.0
  %235 = vmatprep.subr.mxu0 0.0
  %236 = vmatpush1.msra.mxu0 0.0
  %237 = vmatprep.subr.mxu0 0.0
  %238 = vmatpush1.msra.mxu0 0.0
  %239 = vmatprep.subr.mxu0 0.0
  %240 = vmatpush1.msra.mxu0 0.0
  %241 = vmatprep.subr.mxu0 0.0
  %242 = vmatpush1.msra.mxu0 0.0
  %243 = vmatprep.subr.mxu0 0.0
  %244 = vmatpush1.msra.mxu0 0.0
  %245 = vmatprep.subr.mxu0 0.0
  %246 = vmatpush1.msra.mxu0 %v225
  %247 = vmatprep.subr.mxu0 0.0
  %248 = vmatpush1.msra.mxu0 %v69
  %249 = vmatprep.subr.mxu0 0.0
  %250 = vmatpush1.msra.mxu0 %v68
  %251 = vmatprep.subr.mxu0 0.0
  %252 = vmatpush1.msra.mxu0 %v67
  %253 = vmatprep.subr.mxu0 0.0
  %254 = vmatpush1.msra.mxu0 %v66
  %255 = vmatprep.subr.mxu0 0.0
  %256 = vmatpush1.msra.mxu0 %v65
  %257 = vmatprep.subr.mxu0 0.0
  %258 = vmatpush1.msra.mxu0 %v64
  %259 = vmatprep.subr.mxu0 0.0
  %260 = vmatpush2.msra.mxu0 0.0
  %261 = vmatprep.subr.mxu0 0.0
  %262 = vmatpush2.msra.mxu0 0.0
  %263 = vmatprep.subr.mxu0 0.0
  %264 = vmatpush2.msra.mxu0 0.0
  %265 = vmatprep.subr.mxu0 0.0
  %266 = vmatpush2.msra.mxu0 0.0
  %267 = vmatprep.subr.mxu0 0.0
  %268 = vmatpush2.msra.mxu0 0.0
  %269 = vmatprep.subr.mxu0 0.0
  %270 = vmatpush2.msra.mxu0 0.0
  %271 = vmatprep.subr.mxu0 0.0
  %272 = vmatpush2.msra.mxu0 0.0
  %273 = vmatprep.subr.mxu0 0.0
  %274 = vmatpush2.msra.mxu0 0.0
  %275 = vmatprep.subr.mxu0 0.0
  %276 = vmatpush2.msra.mxu0 0.0
  %277 = vmatprep.subr.mxu0 0.0
  %278 = vmatpush2.msra.mxu0 0.0
  %279 = vmatprep.subr.mxu0 0.0
  %280 = vmatpush2.msra.mxu0 0.0
  %281 = vmatprep.subr.mxu0 0.0
  %282 = vmatpush2.msra.mxu0 0.0
  %283 = vmatprep.subr.mxu0 0.0
  %284 = vmatpush2.msra.mxu0 0.0
  %285 = vmatprep.subr.mxu0 0.0
  %286 = vmatpush2.msra.mxu0 0.0
  %287 = vmatprep.subr.mxu0 0.0
  %288 = vmatpush2.msra.mxu0 0.0
  %289 = vmatprep.subr.mxu0 0.0
  %290 = vmatpush2.msra.mxu0 0.0
  %291 = vmatprep.mubr.f32.mxu0 0.0
  %292 = vmatmul.mubr.f32.gmra.mxu0 %v176
  %v293 = vpop.f32.mrf.mxu0
  %v294 = vadd.f32 %v158, %v293
  %v295 = vpop.f32.mrf.mxu0
  %296 = vmatprep.mubr.f32.mxu0 0.0
  %297 = vmatmul.mubr.f32.gmra.mxu0 %v179
  %v298 = vpop.f32.mrf.mxu0
  %v299 = vadd.f32 %v159, %v298
  %v300 = vpop.f32.mrf.mxu0
  %301 = vmatprep.mubr.f32.mxu0 0.0
  %302 = vmatmul.mubr.f32.gmra.mxu0 %v182
  %v303 = vpop.f32.mrf.mxu0
  %v304 = vadd.f32 %v160, %v303
  %v305 = vpop.f32.mrf.mxu0
  %306 = vmatprep.mubr.f32.mxu0 0.0
  %307 = vmatmul.mubr.f32.gmra.mxu0 %v185
  %v308 = vpop.f32.mrf.mxu0
  %v309 = vadd.f32 %v161, %v308
  %v310 = vpop.f32.mrf.mxu0
  %311 = vmatprep.mubr.f32.mxu0 0.0
  %312 = vmatmul.mubr.f32.gmra.mxu0 %v188
  %v313 = vpop.f32.mrf.mxu0
  %v314 = vadd.f32 %v162, %v313
  %v315 = vpop.f32.mrf.mxu0
  %316 = vmatprep.mubr.f32.mxu0 0.0
  %317 = vmatmul.mubr.f32.gmra.mxu0 %v191
  %v318 = vpop.f32.mrf.mxu0
  %v319 = vadd.f32 %v163, %v318
  %v320 = vpop.f32.mrf.mxu0
  %321 = vmatprep.mubr.f32.mxu0 0.0
  %322 = vmatmul.mubr.f32.gmra.mxu0 %v194
  %v323 = vpop.f32.mrf.mxu0
  %v324 = vadd.f32 %v164, %v323
  %v325 = vpop.f32.mrf.mxu0
  %326 = vmatprep.mubr.f32.mxu0 0.0
  %327 = vmatmul.mubr.f32.gmra.mxu0 %v197
  %v328 = vpop.f32.mrf.mxu0
  %v329 = vadd.f32 %v165, %v328
  %v330 = vpop.f32.mrf.mxu0
  %331 = vmatprep.mubr.f32.mxu0 0.0
  %332 = vmatmul.mubr.f32.gmra.mxu0 %v200
  %v333 = vpop.f32.mrf.mxu0
  %v334 = vadd.f32 %v166, %v333
  %v335 = vpop.f32.mrf.mxu0
  %336 = vmatprep.mubr.f32.mxu0 0.0
  %337 = vmatmul.mubr.f32.gmra.mxu0 %v203
  %v338 = vpop.f32.mrf.mxu0
  %v339 = vadd.f32 %v167, %v338
  %v340 = vpop.f32.mrf.mxu0
  %341 = vmatprep.mubr.f32.mxu0 0.0
  %342 = vmatmul.mubr.f32.gmra.mxu0 %v206
  %v343 = vpop.f32.mrf.mxu0
  %v344 = vadd.f32 %v168, %v343
  %v345 = vpop.f32.mrf.mxu0
  %346 = vmatprep.mubr.f32.mxu0 0.0
  %347 = vmatmul.mubr.f32.gmra.mxu0 %v209
  %v348 = vpop.f32.mrf.mxu0
  %v349 = vadd.f32 %v169, %v348
  %v350 = vpop.f32.mrf.mxu0
  %351 = vmatprep.mubr.f32.mxu0 0.0
  %352 = vmatmul.mubr.f32.gmra.mxu0 %v212
  %v353 = vpop.f32.mrf.mxu0
  %v354 = vadd.f32 %v170, %v353
  %v355 = vpop.f32.mrf.mxu0
  %356 = vmatprep.mubr.f32.mxu0 0.0
  %357 = vmatmul.mubr.f32.gmra.mxu0 %v215
  %v358 = vpop.f32.mrf.mxu0
  %v359 = vadd.f32 %v171, %v358
  %v360 = vpop.f32.mrf.mxu0
  %361 = vmatprep.mubr.f32.mxu0 0.0
  %362 = vmatmul.mubr.f32.gmra.mxu0 %v218
  %v363 = vpop.f32.mrf.mxu0
  %v364 = vadd.f32 %v172, %v363
  %v365 = vpop.f32.mrf.mxu0
  %366 = vmatprep.mubr.f32.mxu0 0.0
  %367 = vmatmul.mubr.f32.gmra.mxu0 %v221
  %v368 = vpop.f32.mrf.mxu0
  %v369 = vadd.f32 %v173, %v368
  %v370 = vpop.f32.mrf.mxu0
  %371 = vdwg.mxu0
  %v372 = vld [vmem:[%s4] sm:$0x1]
  %v374 = vlaneseq
  %v375 = vshrl.u32 %v374, 7
  %v376 = vsub.s32 0, %v375
  %v377 = vrot.slane %v372, %v376
  %v379 = vadd.f32 %v294, %v377
  %v380 = vadd.f32 %v299, %v377
  %v381 = vadd.f32 %v304, %v377
  %v382 = vadd.f32 %v309, %v377
  %v383 = vadd.f32 %v314, %v377
  %v384 = vadd.f32 %v319, %v377
  %v385 = vadd.f32 %v324, %v377
  %v386 = vadd.f32 %v329, %v377
  %v387 = vadd.f32 %v334, %v377
  %v388 = vadd.f32 %v339, %v377
  %v389 = vadd.f32 %v344, %v377
  %v390 = vadd.f32 %v349, %v377
  %v391 = vadd.f32 %v354, %v377
  %v392 = vadd.f32 %v359, %v377
  %v393 = vadd.f32 %v364, %v377
  %v394 = vadd.f32 %v369, %v377
  %v395 = vmax.f32 %v379, 0.0
  %v396 = vmax.f32 %v380, 0.0
  %v397 = vmax.f32 %v381, 0.0
  %v398 = vmax.f32 %v382, 0.0
  %v399 = vmax.f32 %v383, 0.0
  %v400 = vmax.f32 %v384, 0.0
  %v401 = vmax.f32 %v385, 0.0
  %v402 = vmax.f32 %v386, 0.0
  %v403 = vmax.f32 %v387, 0.0
  %v404 = vmax.f32 %v388, 0.0
  %v405 = vmax.f32 %v389, 0.0
  %v406 = vmax.f32 %v390, 0.0
  %v407 = vmax.f32 %v391, 0.0
  %v408 = vmax.f32 %v392, 0.0
  %v409 = vmax.f32 %v393, 0.0
  %v410 = vmax.f32 %v394, 0.0
  %v411 = vld [vmem:[%s5] sm:$0xff]
  %v412 = vld [vmem:[%s5 + $0x8] sm:$0xff]
  %v413 = vld [vmem:[%s5 + $0x10] sm:$0xff]
  %v414 = vld [vmem:[%s5 + $0x18] sm:$0xff]
  %v415 = vld [vmem:[%s5 + $0x20] sm:$0xff]
  %v416 = vld [vmem:[%s5 + $0x28] sm:$0xff]
  %v417 = vld [vmem:[%s5 + $0x30] sm:$0xff]
  %v418 = vld [vmem:[%s5 + $0x38] sm:$0xf]
  %v419 = vld [vmem:[%s6] sm:$0x1]
  %v421 = vlaneseq
  %v422 = vshrl.u32 %v421, 7
  %v423 = vsub.s32 0, %v422
  %v424 = vrot.slane %v419, %v423
  %vm426 = vcmask 490496
  %v428 = vsel %vm426, %v395, 0
  %v431 = vsel %vm426, %v396, 0
  %v434 = vsel %vm426, %v397, 0
  %v437 = vsel %vm426, %v398, 0
  %v440 = vsel %vm426, %v399, 0
  %v443 = vsel %vm426, %v400, 0
  %v446 = vsel %vm426, %v401, 0
  %v449 = vsel %vm426, %v402, 0
  %v452 = vsel %vm426, %v403, 0
  %v455 = vsel %vm426, %v404, 0
  %v458 = vsel %vm426, %v405, 0
  %v461 = vsel %vm426, %v406, 0
  %v464 = vsel %vm426, %v407, 0
  %v467 = vsel %vm426, %v408, 0
  %v470 = vsel %vm426, %v409, 0
  %v473 = vsel %vm426, %v410, 0
  %vm475 = vcmask 1043456
  %v477 = vsel %vm475, %v418, 0
  %479 = vmatprep.subr.mxu0 0.0
  %480 = vmatpush1.msra.mxu0 0.0
  %481 = vmatprep.subr.mxu0 0.0
  %482 = vmatpush1.msra.mxu0 0.0
  %483 = vmatprep.subr.mxu0 0.0
  %484 = vmatpush1.msra.mxu0 0.0
  %485 = vmatprep.subr.mxu0 0.0
  %486 = vmatpush1.msra.mxu0 0.0
  %487 = vmatprep.subr.mxu0 0.0
  %488 = vmatpush1.msra.mxu0 0.0
  %489 = vmatprep.subr.mxu0 0.0
  %490 = vmatpush1.msra.mxu0 0.0
  %491 = vmatprep.subr.mxu0 0.0
  %492 = vmatpush1.msra.mxu0 0.0
  %493 = vmatprep.subr.mxu0 0.0
  %494 = vmatpush1.msra.mxu0 0.0
  %495 = vmatprep.subr.mxu0 0.0
  %496 = vmatpush1.msra.mxu0 %v477
  %497 = vmatprep.subr.mxu0 0.0
  %498 = vmatpush1.msra.mxu0 %v417
  %499 = vmatprep.subr.mxu0 0.0
  %500 = vmatpush1.msra.mxu0 %v416
  %501 = vmatprep.subr.mxu0 0.0
  %502 = vmatpush1.msra.mxu0 %v415
  %503 = vmatprep.subr.mxu0 0.0
  %504 = vmatpush1.msra.mxu0 %v414
  %505 = vmatprep.subr.mxu0 0.0
  %506 = vmatpush1.msra.mxu0 %v413
  %507 = vmatprep.subr.mxu0 0.0
  %508 = vmatpush1.msra.mxu0 %v412
  %509 = vmatprep.subr.mxu0 0.0
  %510 = vmatpush1.msra.mxu0 %v411
  %511 = vmatprep.subr.mxu0 0.0
  %512 = vmatpush2.msra.mxu0 0.0
  %513 = vmatprep.subr.mxu0 0.0
  %514 = vmatpush2.msra.mxu0 0.0
  %515 = vmatprep.subr.mxu0 0.0
  %516 = vmatpush2.msra.mxu0 0.0
  %517 = vmatprep.subr.mxu0 0.0
  %518 = vmatpush2.msra.mxu0 0.0
  %519 = vmatprep.subr.mxu0 0.0
  %520 = vmatpush2.msra.mxu0 0.0
  %521 = vmatprep.subr.mxu0 0.0
  %522 = vmatpush2.msra.mxu0 0.0
  %523 = vmatprep.subr.mxu0 0.0
  %524 = vmatpush2.msra.mxu0 0.0
  %525 = vmatprep.subr.mxu0 0.0
  %526 = vmatpush2.msra.mxu0 0.0
  %527 = vmatprep.subr.mxu0 0.0
  %528 = vmatpush2.msra.mxu0 0.0
  %529 = vmatprep.subr.mxu0 0.0
  %530 = vmatpush2.msra.mxu0 0.0
  %531 = vmatprep.subr.mxu0 0.0
  %532 = vmatpush2.msra.mxu0 0.0
  %533 = vmatprep.subr.mxu0 0.0
  %534 = vmatpush2.msra.mxu0 0.0
  %535 = vmatprep.subr.mxu0 0.0
  %536 = vmatpush2.msra.mxu0 0.0
  %537 = vmatprep.subr.mxu0 0.0
  %538 = vmatpush2.msra.mxu0 0.0
  %539 = vmatprep.subr.mxu0 0.0
  %540 = vmatpush2.msra.mxu0 0.0
  %541 = vmatprep.subr.mxu0 0.0
  %542 = vmatpush2.msra.mxu0 0.0
  %543 = vmatprep.mubr.f32.mxu0 0.0
  %544 = vmatmul.mubr.f32.gmra.mxu0 %v428
  %v545 = vpop.f32.mrf.mxu0
  %v546 = vadd.f32 %v424, %v545
  %v547 = vpop.f32.mrf.mxu0
  %548 = vmatprep.mubr.f32.mxu0 0.0
  %549 = vmatmul.mubr.f32.gmra.mxu0 %v431
  %v550 = vpop.f32.mrf.mxu0
  %v551 = vadd.f32 %v424, %v550
  %v552 = vpop.f32.mrf.mxu0
  %553 = vmatprep.mubr.f32.mxu0 0.0
  %554 = vmatmul.mubr.f32.gmra.mxu0 %v434
  %v555 = vpop.f32.mrf.mxu0
  %v556 = vadd.f32 %v424, %v555
  %v557 = vpop.f32.mrf.mxu0
  %558 = vmatprep.mubr.f32.mxu0 0.0
  %559 = vmatmul.mubr.f32.gmra.mxu0 %v437
  %v560 = vpop.f32.mrf.mxu0
  %v561 = vadd.f32 %v424, %v560
  %v562 = vpop.f32.mrf.mxu0
  %563 = vmatprep.mubr.f32.mxu0 0.0
  %564 = vmatmul.mubr.f32.gmra.mxu0 %v440
  %v565 = vpop.f32.mrf.mxu0
  %v566 = vadd.f32 %v424, %v565
  %v567 = vpop.f32.mrf.mxu0
  %568 = vmatprep.mubr.f32.mxu0 0.0
  %569 = vmatmul.mubr.f32.gmra.mxu0 %v443
  %v570 = vpop.f32.mrf.mxu0
  %v571 = vadd.f32 %v424, %v570
  %v572 = vpop.f32.mrf.mxu0
  %573 = vmatprep.mubr.f32.mxu0 0.0
  %574 = vmatmul.mubr.f32.gmra.mxu0 %v446
  %v575 = vpop.f32.mrf.mxu0
  %v576 = vadd.f32 %v424, %v575
  %v577 = vpop.f32.mrf.mxu0
  %578 = vmatprep.mubr.f32.mxu0 0.0
  %579 = vmatmul.mubr.f32.gmra.mxu0 %v449
  %v580 = vpop.f32.mrf.mxu0
  %v581 = vadd.f32 %v424, %v580
  %v582 = vpop.f32.mrf.mxu0
  %583 = vmatprep.mubr.f32.mxu0 0.0
  %584 = vmatmul.mubr.f32.gmra.mxu0 %v452
  %v585 = vpop.f32.mrf.mxu0
  %v586 = vadd.f32 %v424, %v585
  %v587 = vpop.f32.mrf.mxu0
  %588 = vmatprep.mubr.f32.mxu0 0.0
  %589 = vmatmul.mubr.f32.gmra.mxu0 %v455
  %v590 = vpop.f32.mrf.mxu0
  %v591 = vadd.f32 %v424, %v590
  %v592 = vpop.f32.mrf.mxu0
  %593 = vmatprep.mubr.f32.mxu0 0.0
  %594 = vmatmul.mubr.f32.gmra.mxu0 %v458
  %v595 = vpop.f32.mrf.mxu0
  %v596 = vadd.f32 %v424, %v595
  %v597 = vpop.f32.mrf.mxu0
  %598 = vmatprep.mubr.f32.mxu0 0.0
  %599 = vmatmul.mubr.f32.gmra.mxu0 %v461
  %v600 = vpop.f32.mrf.mxu0
  %v601 = vadd.f32 %v424, %v600
  %v602 = vpop.f32.mrf.mxu0
  %603 = vmatprep.mubr.f32.mxu0 0.0
  %604 = vmatmul.mubr.f32.gmra.mxu0 %v464
  %v605 = vpop.f32.mrf.mxu0
  %v606 = vadd.f32 %v424, %v605
  %v607 = vpop.f32.mrf.mxu0
  %608 = vmatprep.mubr.f32.mxu0 0.0
  %609 = vmatmul.mubr.f32.gmra.mxu0 %v467
  %v610 = vpop.f32.mrf.mxu0
  %v611 = vadd.f32 %v424, %v610
  %v612 = vpop.f32.mrf.mxu0
  %613 = vmatprep.mubr.f32.mxu0 0.0
  %614 = vmatmul.mubr.f32.gmra.mxu0 %v470
  %v615 = vpop.f32.mrf.mxu0
  %v616 = vadd.f32 %v424, %v615
  %v617 = vpop.f32.mrf.mxu0
  %618 = vmatprep.mubr.f32.mxu0 0.0
  %619 = vmatmul.mubr.f32.gmra.mxu0 %v473
  %v620 = vpop.f32.mrf.mxu0
  %v621 = vadd.f32 %v424, %v620
  %v622 = vpop.f32.mrf.mxu0
  %623 = vdwg.mxu0
  %v624 = vmax.f32 %v546, 0.0
  %v625 = vmax.f32 %v551, 0.0
  %v626 = vmax.f32 %v556, 0.0
  %v627 = vmax.f32 %v561, 0.0
  %v628 = vmax.f32 %v566, 0.0
  %v629 = vmax.f32 %v571, 0.0
  %v630 = vmax.f32 %v576, 0.0
  %v631 = vmax.f32 %v581, 0.0
  %v632 = vmax.f32 %v586, 0.0
  %v633 = vmax.f32 %v591, 0.0
  %v634 = vmax.f32 %v596, 0.0
  %v635 = vmax.f32 %v601, 0.0
  %v636 = vmax.f32 %v606, 0.0
  %v637 = vmax.f32 %v611, 0.0
  %v638 = vmax.f32 %v616, 0.0
  %v639 = vmax.f32 %v621, 0.0
  %v640 = vld [vmem:[%s7] sm:$0xff]
  %v641 = vld [vmem:[%s8] sm:$0xff]
  %643 = vset.pattern.permute.xlu0 0
  %644 = vperm.xlu0 %643, %v641
  %v645 = vpop.permute.xlu0 %644
  %vm647 = vcmask 162816
  %v649 = vsel %vm647, %v640, 0
  %v652 = vsel %vm647, %v624, 0
  %v655 = vsel %vm647, %v625, 0
  %v658 = vsel %vm647, %v626, 0
  %v661 = vsel %vm647, %v627, 0
  %v664 = vsel %vm647, %v628, 0
  %v667 = vsel %vm647, %v629, 0
  %v670 = vsel %vm647, %v630, 0
  %v673 = vsel %vm647, %v631, 0
  %v676 = vsel %vm647, %v632, 0
  %v679 = vsel %vm647, %v633, 0
  %v682 = vsel %vm647, %v634, 0
  %v685 = vsel %vm647, %v635, 0
  %v688 = vsel %vm647, %v636, 0
  %v691 = vsel %vm647, %v637, 0
  %v694 = vsel %vm647, %v638, 0
  %v697 = vsel %vm647, %v639, 0
  %699 = vmatprep.subr.mxu0 0.0
  %700 = vmatpush1.xpose.msra.mxu0 %v697
  %701 = vmatprep.subr.mxu0 0.0
  %702 = vmatpush1.xpose.msra.mxu0 %v694
  %703 = vmatprep.subr.mxu0 0.0
  %704 = vmatpush1.xpose.msra.mxu0 %v691
  %705 = vmatprep.subr.mxu0 0.0
  %706 = vmatpush1.xpose.msra.mxu0 %v688
  %707 = vmatprep.subr.mxu0 0.0
  %708 = vmatpush1.xpose.msra.mxu0 %v685
  %709 = vmatprep.subr.mxu0 0.0
  %710 = vmatpush1.xpose.msra.mxu0 %v682
  %711 = vmatprep.subr.mxu0 0.0
  %712 = vmatpush1.xpose.msra.mxu0 %v679
  %713 = vmatprep.subr.mxu0 0.0
  %714 = vmatpush1.xpose.msra.mxu0 %v676
  %715 = vmatprep.subr.mxu0 0.0
  %716 = vmatpush1.xpose.msra.mxu0 %v673
  %717 = vmatprep.subr.mxu0 0.0
  %718 = vmatpush1.xpose.msra.mxu0 %v670
  %719 = vmatprep.subr.mxu0 0.0
  %720 = vmatpush1.xpose.msra.mxu0 %v667
  %721 = vmatprep.subr.mxu0 0.0
  %722 = vmatpush1.xpose.msra.mxu0 %v664
  %723 = vmatprep.subr.mxu0 0.0
  %724 = vmatpush1.xpose.msra.mxu0 %v661
  %725 = vmatprep.subr.mxu0 0.0
  %726 = vmatpush1.xpose.msra.mxu0 %v658
  %727 = vmatprep.subr.mxu0 0.0
  %728 = vmatpush1.xpose.msra.mxu0 %v655
  %729 = vmatprep.subr.mxu0 0.0
  %730 = vmatpush1.xpose.msra.mxu0 %v652
  %731 = vmatprep.subr.mxu0 0.0
  %732 = vmatpush2.xpose.msra.mxu0 0.0
  %733 = vmatprep.subr.mxu0 0.0
  %734 = vmatpush2.xpose.msra.mxu0 0.0
  %735 = vmatprep.subr.mxu0 0.0
  %736 = vmatpush2.xpose.msra.mxu0 0.0
  %737 = vmatprep.subr.mxu0 0.0
  %738 = vmatpush2.xpose.msra.mxu0 0.0
  %739 = vmatprep.subr.mxu0 0.0
  %740 = vmatpush2.xpose.msra.mxu0 0.0
  %741 = vmatprep.subr.mxu0 0.0
  %742 = vmatpush2.xpose.msra.mxu0 0.0
  %743 = vmatprep.subr.mxu0 0.0
  %744 = vmatpush2.xpose.msra.mxu0 0.0
  %745 = vmatprep.subr.mxu0 0.0
  %746 = vmatpush2.xpose.msra.mxu0 0.0
  %747 = vmatprep.subr.mxu0 0.0
  %748 = vmatpush2.xpose.msra.mxu0 0.0
  %749 = vmatprep.subr.mxu0 0.0
  %750 = vmatpush2.xpose.msra.mxu0 0.0
  %751 = vmatprep.subr.mxu0 0.0
  %752 = vmatpush2.xpose.msra.mxu0 0.0
  %753 = vmatprep.subr.mxu0 0.0
  %754 = vmatpush2.xpose.msra.mxu0 0.0
  %755 = vmatprep.subr.mxu0 0.0
  %756 = vmatpush2.xpose.msra.mxu0 0.0
  %757 = vmatprep.subr.mxu0 0.0
  %758 = vmatpush2.xpose.msra.mxu0 0.0
  %759 = vmatprep.subr.mxu0 0.0
  %760 = vmatpush2.xpose.msra.mxu0 0.0
  %761 = vmatprep.subr.mxu0 0.0
  %762 = vmatpush2.xpose.msra.mxu0 0.0
  %763 = vmatprep.mubr.f32.mxu0 0.0
  %764 = vmatmul.mubr.f32.gmra.mxu0 %v649
  %v765 = vpop.f32.mrf.mxu0
  %v766 = vadd.f32 %v645, %v765
  %v767 = vpop.f32.mrf.mxu0
  %768 = vdwg.mxu0
  %769 = vst [vmem:[%s9] sm:$0xff] %v766
  // Predicated region
  $region38: #{bomb_net_forward.1} parent=0 // pred_check
    _
  $region39: #{bomb_net_forward.1} parent=0 // pred_check_branch
    %771 = sbr.rel (0) target = $region41
  $region40: #{bomb_net_forward.1} parent=0 // pred_region
    _
  $region41: #{bomb_net_forward.1} parent=0 // pred_fallthru
    _
  // Predicated region
  $region42: #{bomb_net_forward.1} parent=0 // pred_check
    _
  $region43: #{bomb_net_forward.1} parent=0 // pred_check_branch
    %773 = sbr.rel (0) target = $region45
  $region44: #{bomb_net_forward.1} parent=0 // pred_region
    _
  $region45: #{bomb_net_forward.1} parent=0 // pred_fallthru
    _

</llo_original>
